<compile_context>
chip_gen: v7x
topology: tpu7x:2x2x1
jax: 0.10.0
libtpu: 0.0.40
codegen_flags: <defaults>
</compile_context>

<pallas_src>
import math

import jax
import jax.numpy as jnp
from jax.experimental import pallas as pl
from jax.experimental.pallas import tpu as pltpu

LOG_2PI = math.log(2.0 * math.pi)


def _round_up(x, m):
    return ((x + m - 1) // m) * m


# ---------------------------------------------------------------------------
# Kernel
# ---------------------------------------------------------------------------
def _fused_ac_kernel(state_ref, action_ref, inv_var_ref, const_ref,
                     w1_ref, b1_ref, w2_ref, b2_ref, w3_ref, b3_ref,
                     out_ref):
    """One batch tile: fused actor+critic MLP + diag-MVN log_prob."""
    A = action_ref.shape[1]

    s = state_ref[...]                                    # (TB, S), bf16
    # layer 1 (actor||critic): (TB, 128)
    h = jnp.tanh(
        jnp.dot(s, w1_ref[...], preferred_element_type=jnp.float32) + b1_ref[...])
    # layer 2 (block-diag): (TB, 64)
    h = jnp.tanh(
        jnp.dot(h.astype(w2_ref.dtype), w2_ref[...],
                preferred_element_type=jnp.float32) + b2_ref[...])
    # layer 3 (block-diag): (TB, A+1)  -- first A cols = actor head, last = critic
    z = jnp.dot(h.astype(w3_ref.dtype), w3_ref[...],
                preferred_element_type=jnp.float32) + b3_ref[...]

    mean = jnp.tanh(z[:, :A])        # actor has a final Tanh
    value = z[:, A:A + 1]            # critic head is linear

    # diag-covariance MultivariateNormal log_prob(action)
    diff = action_ref[...] - mean
    maha = jnp.sum(diff * diff * inv_var_ref[...], axis=-1, keepdims=True)  # (TB,1)
    logprob = -0.5 * maha + const_ref[0, 0]   # const = -0.5*(A*log2pi + log|Sigma|)

    out_ref[:, 0:1] = logprob
    out_ref[:, 1:2] = value


# ---------------------------------------------------------------------------
# Parameter construction / packing
# ---------------------------------------------------------------------------
def _linear_init(key, fan_in, fan_out):
    # PyTorch nn.Linear default init: U(-1/sqrt(fan_in), 1/sqrt(fan_in))
    kw, kb = jax.random.split(key)
    bound = 1.0 / math.sqrt(fan_in)
    w = jax.random.uniform(kw, (fan_in, fan_out), jnp.float32, -bound, bound)
    b = jax.random.uniform(kb, (1, fan_out), jnp.float32, -bound, bound)
    return w, b


def make_params(key, state_dim, action_dim):
    keys = jax.random.split(key, 6)
    aw1, ab1 = _linear_init(keys[0], state_dim, 64)
    aw2, ab2 = _linear_init(keys[1], 64, 32)
    aw3, ab3 = _linear_init(keys[2], 32, action_dim)
    cw1, cb1 = _linear_init(keys[3], state_dim, 64)
    cw2, cb2 = _linear_init(keys[4], 64, 32)
    cw3, cb3 = _linear_init(keys[5], 32, 1)
    return (aw1, ab1, aw2, ab2, aw3, ab3, cw1, cb1, cw2, cb2, cw3, cb3)


def pack_params(params, compute_dtype=jnp.bfloat16):
    """Fuse actor+critic weights into 3 block-structured layers."""
    (aw1, ab1, aw2, ab2, aw3, ab3, cw1, cb1, cw2, cb2, cw3, cb3) = params
    A = aw3.shape[1]
    w1 = jnp.concatenate([aw1, cw1], axis=1)              # (S, 128)
    b1 = jnp.concatenate([ab1, cb1], axis=1)              # (1, 128)
    w2 = jnp.zeros((128, 64), jnp.float32)
    w2 = w2.at[:64, :32].set(aw2).at[64:, 32:].set(cw2)   # block-diag (128, 64)
    b2 = jnp.concatenate([ab2, cb2], axis=1)               # (1, 64)
    w3 = jnp.zeros((64, A + 1), jnp.float32)
    w3 = w3.at[:32, :A].set(aw3).at[32:, A:].set(cw3)      # block-diag (64, A+1)
    b3 = jnp.concatenate([ab3, cb3], axis=1)                # (1, A+1)
    return (w1.astype(compute_dtype), b1,
            w2.astype(compute_dtype), b2,
            w3.astype(compute_dtype), b3)


# ---------------------------------------------------------------------------
# Wrapper
# ---------------------------------------------------------------------------
def evaluate(params, state, action, action_var, *, tile_b=512,
             compute_dtype=jnp.bfloat16):
    """Pallas implementation of ActorCritic.evaluate(state, action)."""
    B, S = state.shape
    A = action.shape[1]

    # tile size: multiple of 8 sublanes, no larger than (padded) batch
    tile_b = max(8, min(_round_up(B, 8), _round_up(tile_b, 8)))
    Bp = _round_up(B, tile_b)
    if Bp != B:
        state = jnp.pad(state, ((0, Bp - B), (0, 0)))
        action = jnp.pad(action, ((0, Bp - B), (0, 0)))

    w1, b1, w2, b2, w3, b3 = pack_params(params, compute_dtype)
    state_c = state.astype(compute_dtype)                 # bf16 MXU operand stream
    action_f = action.astype(jnp.float32)

    # data-independent scalars hoisted out of the kernel
    inv_var = (1.0 / action_var).reshape(1, A).astype(jnp.float32)
    log_det = jnp.sum(jnp.log(action_var))
    const = (-0.5 * (A * LOG_2PI + log_det)).reshape(1, 1).astype(jnp.float32)

    grid = (Bp // tile_b,)
    H1, H2 = w1.shape[1], w2.shape[1]
    cd_bytes = jnp.dtype(compute_dtype).itemsize
    flops = 2 * Bp * (S * H1 + H1 * H2 + H2 * (A + 1))
    transcendentals = Bp * (H1 + H2 + A)
    bytes_accessed = (Bp * S * cd_bytes + Bp * A * 4 + Bp * 2 * 4
                      + (w1.size + w2.size + w3.size) * cd_bytes
                      + (b1.size + b2.size + b3.size + A + 1) * 4)

    in_specs = [
        pl.BlockSpec((tile_b, S), lambda i: (i, 0)),               # state (streamed)
        pl.BlockSpec((tile_b, A), lambda i: (i, 0)),               # action (streamed)
        pl.BlockSpec((1, A), lambda i: (0, 0)),                    # inv_var (resident)
        pl.BlockSpec(memory_space=pltpu.MemorySpace.SMEM),         # const scalar
        pl.BlockSpec(w1.shape, lambda i: (0, 0)),                  # resident weights
        pl.BlockSpec(b1.shape, lambda i: (0, 0)),
        pl.BlockSpec(w2.shape, lambda i: (0, 0)),
        pl.BlockSpec(b2.shape, lambda i: (0, 0)),
        pl.BlockSpec(w3.shape, lambda i: (0, 0)),
        pl.BlockSpec(b3.shape, lambda i: (0, 0)),
    ]
    out_specs = pl.BlockSpec((tile_b, 2), lambda i: (i, 0))

    out = pl.pallas_call(
        _fused_ac_kernel,
        out_shape=jax.ShapeDtypeStruct((Bp, 2), jnp.float32),
        grid=grid,
        in_specs=in_specs,
        out_specs=out_specs,
        compiler_params=pltpu.CompilerParams(
            dimension_semantics=("parallel",)),
        cost_estimate=pl.CostEstimate(
            flops=flops, transcendentals=transcendentals,
            bytes_accessed=bytes_accessed),
    )(state_c, action_f, inv_var, const, w1, b1, w2, b2, w3, b3)

    logprob = out[:B, 0]
    value = out[:B, 1]
    # entropy of a fixed-covariance diag MVN is batch-constant -> wrapper-side
    entropy_scalar = 0.5 * A * (1.0 + LOG_2PI) + 0.5 * log_det
    entropy = jnp.full((B,), entropy_scalar, jnp.float32)
    return logprob, value, entropy


# ---------------------------------------------------------------------------
# Pure-JAX reference (matches kernel precision: bf16 matmul operands, f32 math)
# ---------------------------------------------------------------------------
def evaluate_ref(params, state, action, action_var, compute_dtype=jnp.bfloat16):
    (aw1, ab1, aw2, ab2, aw3, ab3, cw1, cb1, cw2, cb2, cw3, cb3) = params

    def lin(x, w, b):
        return jnp.dot(x.astype(compute_dtype), w.astype(compute_dtype),
                       preferred_element_type=jnp.float32) + b

    h = jnp.tanh(lin(state, aw1, ab1))
    h = jnp.tanh(lin(h, aw2, ab2))
    mean = jnp.tanh(lin(h, aw3, ab3))
    c = jnp.tanh(lin(state, cw1, cb1))
    c = jnp.tanh(lin(c, cw2, cb2))
    v = lin(c, cw3, cb3)[:, 0]

    A = action_var.shape[-1]
    diff = action - mean
    maha = jnp.sum(diff * diff / action_var[None, :], axis=-1)
    log_det = jnp.sum(jnp.log(action_var))
    logprob = -0.5 * (maha + A * LOG_2PI) - 0.5 * log_det
    entropy = jnp.full_like(logprob, 0.5 * A * (1.0 + LOG_2PI) + 0.5 * log_det)
    return logprob, v, entropy


if __name__ == "__main__":
    B, state_dim, action_dim = 8, 32, 4
    action_std = 0.5

    key = jax.random.PRNGKey(0)
    k_params, k_state, k_action = jax.random.split(key, 3)

    params = make_params(k_params, state_dim, action_dim)
    state = jax.random.normal(k_state, (B, state_dim), jnp.float32)
    action = jax.random.normal(k_action, (B, action_dim), jnp.float32)
    action_var = jnp.full((action_dim,), action_std * action_std, jnp.float32)

    logprob, value, entropy = evaluate(params, state, action, action_var)
    jax.block_until_ready((logprob, value, entropy))

    r_logprob, r_value, r_entropy = evaluate_ref(params, state, action, action_var)
    assert jnp.allclose(logprob, r_logprob, rtol=1e-2, atol=1e-2)
    assert jnp.allclose(value, r_value, rtol=1e-2, atol=1e-2)
    assert jnp.allclose(entropy, r_entropy, rtol=1e-2, atol=1e-2)

    # TODO(synk): act() (MultivariateNormal.sample) is stochastic and forward()
    # raises NotImplementedError in the reference module; only the deterministic
    # evaluate() path is implemented here.
    print("KERNEL_OK")
</pallas_src>

<mosaic_0001>
module attributes {stable_mosaic.version = 11 : i64} {
  func.func @_fused_ac_kernel(%arg0: i32, %arg1: memref<8x32xbf16, #tpu.memory_space<vmem>>, %arg2: memref<8x4xf32, #tpu.memory_space<vmem>>, %arg3: memref<1x4xf32, #tpu.memory_space<vmem>>, %arg4: memref<1x1xf32, #tpu.memory_space<smem>>, %arg5: memref<32x128xbf16, #tpu.memory_space<vmem>>, %arg6: memref<1x128xf32, #tpu.memory_space<vmem>>, %arg7: memref<128x64xbf16, #tpu.memory_space<vmem>>, %arg8: memref<1x64xf32, #tpu.memory_space<vmem>>, %arg9: memref<64x5xbf16, #tpu.memory_space<vmem>>, %arg10: memref<1x5xf32, #tpu.memory_space<vmem>>, %arg11: memref<8x2xf32, #tpu.memory_space<vmem>>) attributes {dimension_semantics = [#tpu.dimension_semantics<parallel>], iteration_bounds = array<i64: 1>, scalar_prefetch = 0 : i64, scratch_operands = 0 : i64, tpu.core_type = #tpu.core_type<tc>, window_params = [{transform_indices = @transform_0, window_bounds = array<i64: 8, 32>}, {transform_indices = @transform_1, window_bounds = array<i64: 8, 4>}, {pipeline_mode = #tpu.pipeline_mode<synchronous>, transform_indices = @transform_2, window_bounds = array<i64: 1, 4>}, {transform_indices = @transform_3, window_bounds = array<i64: 1, 1>}, {pipeline_mode = #tpu.pipeline_mode<synchronous>, transform_indices = @transform_4, window_bounds = array<i64: 32, 128>}, {pipeline_mode = #tpu.pipeline_mode<synchronous>, transform_indices = @transform_5, window_bounds = array<i64: 1, 128>}, {pipeline_mode = #tpu.pipeline_mode<synchronous>, transform_indices = @transform_6, window_bounds = array<i64: 128, 64>}, {pipeline_mode = #tpu.pipeline_mode<synchronous>, transform_indices = @transform_7, window_bounds = array<i64: 1, 64>}, {pipeline_mode = #tpu.pipeline_mode<synchronous>, transform_indices = @transform_8, window_bounds = array<i64: 64, 5>}, {pipeline_mode = #tpu.pipeline_mode<synchronous>, transform_indices = @transform_9, window_bounds = array<i64: 1, 5>}, {transform_indices = @transform_10, window_bounds = array<i64: 8, 2>}]} {
    %c0 = arith.constant 0 : index
    %c0_0 = arith.constant 0 : index
    %0 = vector.load %arg1[%c0, %c0_0] : memref<8x32xbf16, #tpu.memory_space<vmem>>, vector<8x32xbf16>
    %c0_1 = arith.constant 0 : index
    %c0_2 = arith.constant 0 : index
    %1 = vector.load %arg5[%c0_1, %c0_2] : memref<32x128xbf16, #tpu.memory_space<vmem>>, vector<32x128xbf16>
    %cst = arith.constant dense<0.000000e+00> : vector<8x128xf32>
    %2 = tpu.matmul %0, %1, %cst {dimension_numbers = #tpu.dot_dimension_numbers<[1], [0], [0], [1], [0, 0, 1, 1], [], []>} : vector<8x32xbf16>, vector<32x128xbf16>, vector<8x128xf32> -> vector<8x128xf32>
    %c0_3 = arith.constant 0 : index
    %c0_4 = arith.constant 0 : index
    %3 = vector.load %arg6[%c0_3, %c0_4] : memref<1x128xf32, #tpu.memory_space<vmem>>, vector<1x128xf32>
    %4 = vector.broadcast %3 : vector<1x128xf32> to vector<8x128xf32>
    %5 = arith.addf %2, %4 : vector<8x128xf32>
    %6 = math.tanh %5 : vector<8x128xf32>
    %7 = arith.truncf %6 : vector<8x128xf32> to vector<8x128xbf16>
    %c0_5 = arith.constant 0 : index
    %c0_6 = arith.constant 0 : index
    %8 = vector.load %arg7[%c0_5, %c0_6] : memref<128x64xbf16, #tpu.memory_space<vmem>>, vector<128x64xbf16>
    %cst_7 = arith.constant dense<0.000000e+00> : vector<8x64xf32>
    %9 = tpu.matmul %7, %8, %cst_7 {dimension_numbers = #tpu.dot_dimension_numbers<[1], [0], [0], [1], [0, 0, 1, 1], [], []>} : vector<8x128xbf16>, vector<128x64xbf16>, vector<8x64xf32> -> vector<8x64xf32>
    %c0_8 = arith.constant 0 : index
    %c0_9 = arith.constant 0 : index
    %10 = vector.load %arg8[%c0_8, %c0_9] : memref<1x64xf32, #tpu.memory_space<vmem>>, vector<1x64xf32>
    %11 = vector.broadcast %10 : vector<1x64xf32> to vector<8x64xf32>
    %12 = arith.addf %9, %11 : vector<8x64xf32>
    %13 = math.tanh %12 : vector<8x64xf32>
    %14 = arith.truncf %13 : vector<8x64xf32> to vector<8x64xbf16>
    %c0_10 = arith.constant 0 : index
    %c0_11 = arith.constant 0 : index
    %15 = vector.load %arg9[%c0_10, %c0_11] : memref<64x5xbf16, #tpu.memory_space<vmem>>, vector<64x5xbf16>
    %cst_12 = arith.constant dense<0.000000e+00> : vector<8x5xf32>
    %16 = tpu.matmul %14, %15, %cst_12 {dimension_numbers = #tpu.dot_dimension_numbers<[1], [0], [0], [1], [0, 0, 1, 1], [], []>} : vector<8x64xbf16>, vector<64x5xbf16>, vector<8x5xf32> -> vector<8x5xf32>
    %c0_13 = arith.constant 0 : index
    %c0_14 = arith.constant 0 : index
    %17 = vector.load %arg10[%c0_13, %c0_14] : memref<1x5xf32, #tpu.memory_space<vmem>>, vector<1x5xf32>
    %18 = vector.broadcast %17 : vector<1x5xf32> to vector<8x5xf32>
    %19 = arith.addf %16, %18 : vector<8x5xf32>
    %20 = vector.extract_strided_slice %19 {offsets = [0, 0], sizes = [8, 4], strides = [1, 1]} : vector<8x5xf32> to vector<8x4xf32>
    %21 = math.tanh %20 : vector<8x4xf32>
    %22 = vector.extract_strided_slice %19 {offsets = [0, 4], sizes = [8, 1], strides = [1, 1]} : vector<8x5xf32> to vector<8x1xf32>
    %c0_15 = arith.constant 0 : index
    %c0_16 = arith.constant 0 : index
    %23 = vector.load %arg2[%c0_15, %c0_16] : memref<8x4xf32, #tpu.memory_space<vmem>>, vector<8x4xf32>
    %24 = arith.subf %23, %21 : vector<8x4xf32>
    %25 = arith.mulf %24, %24 : vector<8x4xf32>
    %c0_17 = arith.constant 0 : index
    %c0_18 = arith.constant 0 : index
    %26 = vector.load %arg3[%c0_17, %c0_18] : memref<1x4xf32, #tpu.memory_space<vmem>>, vector<1x4xf32>
    %27 = vector.broadcast %26 : vector<1x4xf32> to vector<8x4xf32>
    %28 = arith.mulf %25, %27 : vector<8x4xf32>
    %cst_19 = arith.constant dense<0.000000e+00> : vector<8xf32>
    %29 = vector.multi_reduction <add>, %28, %cst_19 [1] : vector<8x4xf32> to vector<8xf32>
    %30 = vector.shape_cast %29 : vector<8xf32> to vector<8x1xf32>
    %cst_20 = arith.constant -5.000000e-01 : f32
    %31 = vector.broadcast %cst_20 : f32 to vector<8x1xf32>
    %32 = arith.mulf %31, %30 : vector<8x1xf32>
    %c0_21 = arith.constant 0 : index
    %c0_22 = arith.constant 0 : index
    %33 = memref.load %arg4[%c0_21, %c0_22] : memref<1x1xf32, #tpu.memory_space<smem>>
    %34 = vector.broadcast %33 : f32 to vector<8x1xf32>
    %35 = arith.addf %32, %34 : vector<8x1xf32>
    %c0_23 = arith.constant 0 : index
    %c0_24 = arith.constant 0 : index
    %36 = vector.load %arg11[%c0_23, %c0_24] : memref<8x2xf32, #tpu.memory_space<vmem>>, vector<8x1xf32>
    tpu.vector_store %arg11[%c0_23, %c0_24], %35 {strides = array<i32>} : memref<8x2xf32, #tpu.memory_space<vmem>>, vector<8x1xf32>,
    %c0_25 = arith.constant 0 : index
    %c1 = arith.constant 1 : index
    %37 = vector.load %arg11[%c0_25, %c1] : memref<8x2xf32, #tpu.memory_space<vmem>>, vector<8x1xf32>
    tpu.vector_store %arg11[%c0_25, %c1], %22 {strides = array<i32>} : memref<8x2xf32, #tpu.memory_space<vmem>>, vector<8x1xf32>,
    return
  }
  func.func @transform_0(%arg0: i32) -> (i32, i32) {
    %c0_i32 = arith.constant 0 : i32
    %c0_i32_0 = arith.constant 0 : i32
    return %arg0, %c0_i32 : i32, i32
  }
  func.func @transform_1(%arg0: i32) -> (i32, i32) {
    %c0_i32 = arith.constant 0 : i32
    %c0_i32_0 = arith.constant 0 : i32
    return %arg0, %c0_i32 : i32, i32
  }
  func.func @transform_2(%arg0: i32) -> (i32, i32) {
    %c0_i32 = arith.constant 0 : i32
    %c0_i32_0 = arith.constant 0 : i32
    %c0_i32_1 = arith.constant 0 : i32
    return %c0_i32, %c0_i32_0 : i32, i32
  }
  func.func @transform_3(%arg0: i32) -> (i32, i32) {
    %c0_i32 = arith.constant 0 : i32
    %c0_i32_0 = arith.constant 0 : i32
    %c0_i32_1 = arith.constant 0 : i32
    return %c0_i32, %c0_i32_0 : i32, i32
  }
  func.func @transform_4(%arg0: i32) -> (i32, i32) {
    %c0_i32 = arith.constant 0 : i32
    %c0_i32_0 = arith.constant 0 : i32
    %c0_i32_1 = arith.constant 0 : i32
    return %c0_i32, %c0_i32_0 : i32, i32
  }
  func.func @transform_5(%arg0: i32) -> (i32, i32) {
    %c0_i32 = arith.constant 0 : i32
    %c0_i32_0 = arith.constant 0 : i32
    %c0_i32_1 = arith.constant 0 : i32
    return %c0_i32, %c0_i32_0 : i32, i32
  }
  func.func @transform_6(%arg0: i32) -> (i32, i32) {
    %c0_i32 = arith.constant 0 : i32
    %c0_i32_0 = arith.constant 0 : i32
    %c0_i32_1 = arith.constant 0 : i32
    return %c0_i32, %c0_i32_0 : i32, i32
  }
  func.func @transform_7(%arg0: i32) -> (i32, i32) {
    %c0_i32 = arith.constant 0 : i32
    %c0_i32_0 = arith.constant 0 : i32
    %c0_i32_1 = arith.constant 0 : i32
    return %c0_i32, %c0_i32_0 : i32, i32
  }
  func.func @transform_8(%arg0: i32) -> (i32, i32) {
    %c0_i32 = arith.constant 0 : i32
    %c0_i32_0 = arith.constant 0 : i32
    %c0_i32_1 = arith.constant 0 : i32
    return %c0_i32, %c0_i32_0 : i32, i32
  }
  func.func @transform_9(%arg0: i32) -> (i32, i32) {
    %c0_i32 = arith.constant 0 : i32
    %c0_i32_0 = arith.constant 0 : i32
    %c0_i32_1 = arith.constant 0 : i32
    return %c0_i32, %c0_i32_0 : i32, i32
  }
  func.func @transform_10(%arg0: i32) -> (i32, i32) {
    %c0_i32 = arith.constant 0 : i32
    %c0_i32_0 = arith.constant 0 : i32
    return %arg0, %c0_i32 : i32, i32
  }
}

</mosaic_0001>

<llo_original>
// kernel: tpu_custom_call.1
$region0: #{tpu_custom_call.1}
  #allocation0 [shape = 'u32[]', space=smem, size = 0x4, offset = 0x4, fixed_abs, tag = 'smem constant byte address 0x4 - core index']
  #allocation1 [shape = 'u32[144,128]{1,0:T(1,128)}', space=vmem, size = 0x12000, scoped, tag = 'internal scratch']
  #allocation2 [shape = 'f32[1,1]{1,0:T(1,128)S(6)}', space=smem, size = 0x200, scoped, tag = 'scoped memory for tpu_custom_call.1']
  %s0 = inlined_call_operand.vmem [shape: bf16[8,32], index: 0, kind: input, shape index: {}]
  %s1 = inlined_call_operand.vmem [shape: f32[8,4], index: 1, kind: input, shape index: {}]
  %s2 = inlined_call_operand.vmem [shape: f32[1,4], index: 2, kind: input, shape index: {}]
  %s3 = inlined_call_operand.<no memory space> [shape: f32[1,1], index: 3, kind: input, shape index: {}]
  %s4 = inlined_call_operand.vmem [shape: bf16[32,128], index: 4, kind: input, shape index: {}]
  %s5 = inlined_call_operand.vmem [shape: f32[1,128], index: 5, kind: input, shape index: {}]
  %s6 = inlined_call_operand.vmem [shape: bf16[128,64], index: 6, kind: input, shape index: {}]
  %s7 = inlined_call_operand.vmem [shape: f32[1,64], index: 7, kind: input, shape index: {}]
  %s8 = inlined_call_operand.vmem [shape: bf16[64,5], index: 8, kind: input, shape index: {}]
  %s9 = inlined_call_operand.vmem [shape: f32[1,5], index: 9, kind: input, shape index: {}]
  %s10 = inlined_call_operand.vmem [shape: f32[8,2], index: 10, kind: output, shape index: {}]
  %s11 = sld [smem:[#allocation0]]
  $region50: #{tpu_custom_call.1} parent=0
    _
  %s13 = ssub.s32 1, %s11
  %s14 = scalar_select 0, %s13, %s11
  %15 = sst [smem:[#allocation2]] %s3
  // Predicated region
  $region2: #{tpu_custom_call.1} parent=0 // pred_check
    _
  $region3: #{tpu_custom_call.1} parent=0 // pred_check_branch
    %17 = sbr.rel (0) target = $region5
  $region4: #{tpu_custom_call.1} parent=0 // pred_region
    _
  $region5: #{tpu_custom_call.1} parent=0 // pred_fallthru
    _
  // Predicated region
  $region6: #{tpu_custom_call.1} parent=0 // pred_check
    _
  $region7: #{tpu_custom_call.1} parent=0 // pred_check_branch
    %19 = sbr.rel (0) target = $region9
  $region8: #{tpu_custom_call.1} parent=0 // pred_region
    _
  $region9: #{tpu_custom_call.1} parent=0 // pred_fallthru
    _
  // Predicated region
  $region10: #{tpu_custom_call.1} parent=0 // pred_check
    _
  $region11: #{tpu_custom_call.1} parent=0 // pred_check_branch
    %21 = sbr.rel (0) target = $region13
  $region12: #{tpu_custom_call.1} parent=0 // pred_region
    _
  $region13: #{tpu_custom_call.1} parent=0 // pred_fallthru
    _
  // Predicated region
  $region14: #{tpu_custom_call.1} parent=0 // pred_check
    _
  $region15: #{tpu_custom_call.1} parent=0 // pred_check_branch
    %23 = sbr.rel (0) target = $region17
  $region16: #{tpu_custom_call.1} parent=0 // pred_region
    _
  $region17: #{tpu_custom_call.1} parent=0 // pred_fallthru
    _
  // Predicated region
  $region18: #{tpu_custom_call.1} parent=0 // pred_check
    _
  $region19: #{tpu_custom_call.1} parent=0 // pred_check_branch
    %25 = sbr.rel (0) target = $region21
  $region20: #{tpu_custom_call.1} parent=0 // pred_region
    _
  $region21: #{tpu_custom_call.1} parent=0 // pred_fallthru
    _
  // Predicated region
  $region22: #{tpu_custom_call.1} parent=0 // pred_check
    _
  $region23: #{tpu_custom_call.1} parent=0 // pred_check_branch
    %27 = sbr.rel (0) target = $region25
  $region24: #{tpu_custom_call.1} parent=0 // pred_region
    _
  $region25: #{tpu_custom_call.1} parent=0 // pred_fallthru
    _
  // Predicated region
  $region26: #{tpu_custom_call.1} parent=0 // pred_check
    _
  $region27: #{tpu_custom_call.1} parent=0 // pred_check_branch
    %29 = sbr.rel (0) target = $region29
  $region28: #{tpu_custom_call.1} parent=0 // pred_region
    _
  $region29: #{tpu_custom_call.1} parent=0 // pred_fallthru
    _
  // Predicated region
  $region30: #{tpu_custom_call.1} parent=0 // pred_check
    _
  $region31: #{tpu_custom_call.1} parent=0 // pred_check_branch
    %31 = sbr.rel (0) target = $region33
  $region32: #{tpu_custom_call.1} parent=0 // pred_region
    _
  $region33: #{tpu_custom_call.1} parent=0 // pred_fallthru
    _
  // Predicated region
  $region34: #{tpu_custom_call.1} parent=0 // pred_check
    _
  $region35: #{tpu_custom_call.1} parent=0 // pred_check_branch
    %33 = sbr.rel (0) target = $region37
  $region36: #{tpu_custom_call.1} parent=0 // pred_region
    _
  $region37: #{tpu_custom_call.1} parent=0 // pred_fallthru
    _
  // Predicated region
  $region38: #{tpu_custom_call.1} parent=0 // pred_check
    _
  $region39: #{tpu_custom_call.1} parent=0 // pred_check_branch
    %35 = sbr.rel (0) target = $region41
  $region40: #{tpu_custom_call.1} parent=0 // pred_region
    _
  $region41: #{tpu_custom_call.1} parent=0 // pred_fallthru
    _
  %v37 = vld [vmem:[%s0] sm:$0xf]
  %v38 = vld [vmem:[%s4] sm:$0xf]
  %v39 = vld [vmem:[%s4 + $0x4] sm:$0xf]
  %v40 = vld [vmem:[%s4 + $0x8] sm:$0xf]
  %v41 = vld [vmem:[%s4 + $0xc] sm:$0xf]
  %v42 = vld [vmem:[%s5] sm:$0x1]
  %v44 = vlaneseq
  %v45 = vshrl.u32 %v44, 7
  %v46 = vsub.s32 0, %v45
  %v47 = vrot.slane %v42, %v46
  %v53 = vunpack.c.l.b16 %v38
  %v54 = vunpack.c.l.b16 %v39
  %v55 = vunpack.c.l.b16 %v40
  %v56 = vunpack.c.l.b16 %v41
  %v57 = vpack.c.b16 %v54, %v53
  %v58 = vpack.c.b16 %v56, %v55
  %vm61 = vcmask 261120
  %v63 = vsel %vm61, %v37, 0
  %65 = vmatprep.subr.bf16.mxu0 0
  %66 = vmatpush1.bf16.msra.mxu0 %v57
  %67 = vmatprep.subr.bf16.mxu0 0
  %68 = vmatpush1.bf16.msra.mxu0 %v58
  %69 = vmatprep.subr.bf16.mxu0 0
  %70 = vmatpush1.bf16.msra.mxu0 0
  %71 = vmatprep.subr.bf16.mxu0 0
  %72 = vmatpush1.bf16.msra.mxu0 0
  %73 = vmatprep.subr.bf16.mxu0 0
  %74 = vmatpush1.bf16.msra.mxu0 0
  %75 = vmatprep.subr.bf16.mxu0 0
  %76 = vmatpush1.bf16.msra.mxu0 0
  %77 = vmatprep.subr.bf16.mxu0 0
  %78 = vmatpush1.bf16.msra.mxu0 0
  %79 = vmatprep.subr.bf16.mxu0 0
  %80 = vmatpush1.bf16.msra.mxu0 0
  %81 = vmatprep.subr.bf16.mxu0 0
  %82 = vmatpush1.bf16.msra.mxu0 0
  %83 = vmatprep.subr.bf16.mxu0 0
  %84 = vmatpush1.bf16.msra.mxu0 0
  %85 = vmatprep.subr.bf16.mxu0 0
  %86 = vmatpush1.bf16.msra.mxu0 0
  %87 = vmatprep.subr.bf16.mxu0 0
  %88 = vmatpush1.bf16.msra.mxu0 0
  %89 = vmatprep.subr.bf16.mxu0 0
  %90 = vmatpush1.bf16.msra.mxu0 0
  %91 = vmatprep.subr.bf16.mxu0 0
  %92 = vmatpush1.bf16.msra.mxu0 0
  %93 = vmatprep.subr.bf16.mxu0 0
  %94 = vmatpush1.bf16.msra.mxu0 0
  %95 = vmatprep.subr.bf16.mxu0 0
  %96 = vmatpush1.bf16.msra.mxu0 0
  %97 = vmatprep.mubr.bf16.mxu0 0
  %98 = vmatmul.mubr.bf16.gmra.mrb[0].mxu0 %v63
  %v99 = vpop.f32.mrb[0].mxu0
  %v100 = vadd.f32 %v47, %v99
  %v101 = vpop.f32.mrb[0].mxu0
  %v102 = vpop.f32.mrb[0].mxu0
  %v103 = vpop.f32.mrb[0].mxu0
  %104 = vdwg.mxu0
  %v105 = vtanh.pop %v100
  %v106 = vpack.c.bf16 %v105, %v105
  %v107 = vld [vmem:[%s6] sm:$0xf]
  %v108 = vld [vmem:[%s6 + $0x4] sm:$0xf]
  %v109 = vld [vmem:[%s6 + $0x8] sm:$0xf]
  %v110 = vld [vmem:[%s6 + $0xc] sm:$0xf]
  %v111 = vld [vmem:[%s6 + $0x10] sm:$0xf]
  %v112 = vld [vmem:[%s6 + $0x14] sm:$0xf]
  %v113 = vld [vmem:[%s6 + $0x18] sm:$0xf]
  %v114 = vld [vmem:[%s6 + $0x1c] sm:$0xf]
  %v115 = vld [vmem:[%s6 + $0x20] sm:$0xf]
  %v116 = vld [vmem:[%s6 + $0x24] sm:$0xf]
  %v117 = vld [vmem:[%s6 + $0x28] sm:$0xf]
  %v118 = vld [vmem:[%s6 + $0x2c] sm:$0xf]
  %v119 = vld [vmem:[%s6 + $0x30] sm:$0xf]
  %v120 = vld [vmem:[%s6 + $0x34] sm:$0xf]
  %v121 = vld [vmem:[%s6 + $0x38] sm:$0xf]
  %v122 = vld [vmem:[%s6 + $0x3c] sm:$0xf]
  %v123 = vld [vmem:[%s7] sm:$0x1]
  %v125 = vlaneseq
  %v126 = vshrl.u32 %v125, 7
  %v127 = vsub.s32 0, %v126
  %v128 = vrot.slane %v123, %v127
  %v146 = vunpack.c.l.b16 %v107
  %v147 = vunpack.c.l.b16 %v108
  %v148 = vunpack.c.l.b16 %v109
  %v149 = vunpack.c.l.b16 %v110
  %v150 = vunpack.c.l.b16 %v111
  %v151 = vunpack.c.l.b16 %v112
  %v152 = vunpack.c.l.b16 %v113
  %v153 = vunpack.c.l.b16 %v114
  %v154 = vunpack.c.l.b16 %v115
  %v155 = vunpack.c.l.b16 %v116
  %v156 = vunpack.c.l.b16 %v117
  %v157 = vunpack.c.l.b16 %v118
  %v158 = vunpack.c.l.b16 %v119
  %v159 = vunpack.c.l.b16 %v120
  %v160 = vunpack.c.l.b16 %v121
  %v161 = vunpack.c.l.b16 %v122
  %v162 = vpack.c.b16 %v147, %v146
  %v163 = vpack.c.b16 %v149, %v148
  %v164 = vpack.c.b16 %v151, %v150
  %v165 = vpack.c.b16 %v153, %v152
  %v166 = vpack.c.b16 %v155, %v154
  %v167 = vpack.c.b16 %v157, %v156
  %v168 = vpack.c.b16 %v159, %v158
  %v169 = vpack.c.b16 %v161, %v160
  %178 = vmatprep.subr.bf16.mxu0 0
  %179 = vmatpush1.bf16.msra.mxu0 %v162
  %180 = vmatprep.subr.bf16.mxu0 0
  %181 = vmatpush1.bf16.msra.mxu0 %v163
  %182 = vmatprep.subr.bf16.mxu0 0
  %183 = vmatpush1.bf16.msra.mxu0 %v164
  %184 = vmatprep.subr.bf16.mxu0 0
  %185 = vmatpush1.bf16.msra.mxu0 %v165
  %186 = vmatprep.subr.bf16.mxu0 0
  %187 = vmatpush1.bf16.msra.mxu0 %v166
  %188 = vmatprep.subr.bf16.mxu0 0
  %189 = vmatpush1.bf16.msra.mxu0 %v167
  %190 = vmatprep.subr.bf16.mxu0 0
  %191 = vmatpush1.bf16.msra.mxu0 %v168
  %192 = vmatprep.subr.bf16.mxu0 0
  %193 = vmatpush1.bf16.msra.mxu0 %v169
  %194 = vmatprep.subr.bf16.mxu0 0
  %195 = vmatpush1.bf16.msra.mxu0 0
  %196 = vmatprep.subr.bf16.mxu0 0
  %197 = vmatpush1.bf16.msra.mxu0 0
  %198 = vmatprep.subr.bf16.mxu0 0
  %199 = vmatpush1.bf16.msra.mxu0 0
  %200 = vmatprep.subr.bf16.mxu0 0
  %201 = vmatpush1.bf16.msra.mxu0 0
  %202 = vmatprep.subr.bf16.mxu0 0
  %203 = vmatpush1.bf16.msra.mxu0 0
  %204 = vmatprep.subr.bf16.mxu0 0
  %205 = vmatpush1.bf16.msra.mxu0 0
  %206 = vmatprep.subr.bf16.mxu0 0
  %207 = vmatpush1.bf16.msra.mxu0 0
  %208 = vmatprep.subr.bf16.mxu0 0
  %209 = vmatpush1.bf16.msra.mxu0 0
  %210 = vmatprep.mubr.bf16.mxu0 0
  %211 = vmatmul.mubr.bf16.gmra.mrb[0].mxu0 %v106
  %v212 = vpop.f32.mrb[0].mxu0
  %v213 = vadd.f32 %v128, %v212
  %v214 = vpop.f32.mrb[0].mxu0
  %v215 = vpop.f32.mrb[0].mxu0
  %v216 = vpop.f32.mrb[0].mxu0
  %217 = vdwg.mxu0
  %v218 = vtanh.pop %v213
  %v219 = vpack.c.bf16 %v218, %v218
  %v220 = vld [vmem:[%s8] sm:$0xf]
  %v221 = vld [vmem:[%s8 + $0x4] sm:$0xf]
  %v222 = vld [vmem:[%s8 + $0x8] sm:$0xf]
  %v223 = vld [vmem:[%s8 + $0xc] sm:$0xf]
  %v224 = vld [vmem:[%s8 + $0x10] sm:$0xf]
  %v225 = vld [vmem:[%s8 + $0x14] sm:$0xf]
  %v226 = vld [vmem:[%s8 + $0x18] sm:$0xf]
  %v227 = vld [vmem:[%s8 + $0x1c] sm:$0xf]
  %v228 = vld [vmem:[%s9] sm:$0x1]
  %v230 = vlaneseq
  %v231 = vshrl.u32 %v230, 7
  %v232 = vsub.s32 0, %v231
  %v233 = vrot.slane %v228, %v232
  %v243 = vunpack.c.l.b16 %v220
  %v244 = vunpack.c.l.b16 %v221
  %v245 = vunpack.c.l.b16 %v222
  %v246 = vunpack.c.l.b16 %v223
  %v247 = vunpack.c.l.b16 %v224
  %v248 = vunpack.c.l.b16 %v225
  %v249 = vunpack.c.l.b16 %v226
  %v250 = vunpack.c.l.b16 %v227
  %v251 = vpack.c.b16 %v244, %v243
  %v252 = vpack.c.b16 %v246, %v245
  %v253 = vpack.c.b16 %v248, %v247
  %v254 = vpack.c.b16 %v250, %v249
  %vm259 = vcmask 523264
  %v261 = vsel %vm259, %v219, 0
  %263 = vmatprep.subr.bf16.mxu0 0
  %264 = vmatpush1.bf16.msra.mxu0 %v251
  %265 = vmatprep.subr.bf16.mxu0 0
  %266 = vmatpush1.bf16.msra.mxu0 %v252
  %267 = vmatprep.subr.bf16.mxu0 0
  %268 = vmatpush1.bf16.msra.mxu0 %v253
  %269 = vmatprep.subr.bf16.mxu0 0
  %270 = vmatpush1.bf16.msra.mxu0 %v254
  %271 = vmatprep.subr.bf16.mxu0 0
  %272 = vmatpush1.bf16.msra.mxu0 0
  %273 = vmatprep.subr.bf16.mxu0 0
  %274 = vmatpush1.bf16.msra.mxu0 0
  %275 = vmatprep.subr.bf16.mxu0 0
  %276 = vmatpush1.bf16.msra.mxu0 0
  %277 = vmatprep.subr.bf16.mxu0 0
  %278 = vmatpush1.bf16.msra.mxu0 0
  %279 = vmatprep.subr.bf16.mxu0 0
  %280 = vmatpush1.bf16.msra.mxu0 0
  %281 = vmatprep.subr.bf16.mxu0 0
  %282 = vmatpush1.bf16.msra.mxu0 0
  %283 = vmatprep.subr.bf16.mxu0 0
  %284 = vmatpush1.bf16.msra.mxu0 0
  %285 = vmatprep.subr.bf16.mxu0 0
  %286 = vmatpush1.bf16.msra.mxu0 0
  %287 = vmatprep.subr.bf16.mxu0 0
  %288 = vmatpush1.bf16.msra.mxu0 0
  %289 = vmatprep.subr.bf16.mxu0 0
  %290 = vmatpush1.bf16.msra.mxu0 0
  %291 = vmatprep.subr.bf16.mxu0 0
  %292 = vmatpush1.bf16.msra.mxu0 0
  %293 = vmatprep.subr.bf16.mxu0 0
  %294 = vmatpush1.bf16.msra.mxu0 0
  %295 = vmatprep.mubr.bf16.mxu0 0
  %296 = vmatmul.mubr.bf16.gmra.mrb[0].mxu0 %v261
  %v297 = vpop.f32.mrb[0].mxu0
  %v298 = vadd.f32 %v233, %v297
  %v299 = vpop.f32.mrb[0].mxu0
  %v300 = vpop.f32.mrb[0].mxu0
  %v301 = vpop.f32.mrb[0].mxu0
  %302 = vdwg.mxu0
  %v303 = vtanh.pop %v298
  %v304 = vld [vmem:[%s1] sm:$0xff]
  %v305 = vsub.f32 %v304, %v303
  %v306 = vmul.f32 %v305, %v305
  %v307 = vld [vmem:[%s2] sm:$0x1]
  %v309 = vlaneseq
  %v310 = vshrl.u32 %v309, 7
  %v311 = vsub.s32 0, %v310
  %v312 = vrot.slane %v307, %v311
  %v314 = vmul.f32 %v306, %v312
  %vm315 = vcmask 31744
  %v316 = vsel %vm315, %v314, 0.0
  %317 = vadd.xlane.f32.xlu0 %v316
  %v318 = vpop.xlane.xlu0 %317
  %v319 = vmul.f32 %v318, -0.5
  %s320 = sld [smem:[#allocation2]]
  %v321 = vstv %s320
  %v322 = vadd.f32 %v319, %v321
  %vm323 = vcmask 7168
  %324 = vst.msk [vmem:[%s10] sm:$0xff] %vm323, %v322
  %326 = vrot.lane.b32.xlu0 %v298, 125
  %v327 = vpop.permute.xlu0 %326
  %vm329 = vcmask 15368
  %330 = vst.msk [vmem:[%s10] sm:$0xff] %vm329, %v327
  // Predicated region
  $region42: #{tpu_custom_call.1} parent=0 // pred_check
    _
  $region43: #{tpu_custom_call.1} parent=0 // pred_check_branch
    %332 = sbr.rel (0) target = $region45
  $region44: #{tpu_custom_call.1} parent=0 // pred_region
    _
  $region45: #{tpu_custom_call.1} parent=0 // pred_fallthru
    _
  // Predicated region
  $region46: #{tpu_custom_call.1} parent=0 // pred_check
    _
  $region47: #{tpu_custom_call.1} parent=0 // pred_check_branch
    %334 = sbr.rel (0) target = $region49
  $region48: #{tpu_custom_call.1} parent=0 // pred_region
    _
  $region49: #{tpu_custom_call.1} parent=0 // pred_fallthru
    _

</llo_original>
